<compile_context>
chip_gen: v5e
topology: v5e:2x2
jax: 0.10.0
libtpu: 0.0.40
codegen_flags: <defaults>
</compile_context>

<pallas_src>
import jax
import jax.numpy as jnp
from jax.experimental import pallas as pl
from jax.experimental.pallas import tpu as pltpu


def _softmax_c_kernel(x_ref, o_ref):
    """Numerically-stable softmax over axis 1 of a (1, C, T) block."""
    x = x_ref[...].astype(jnp.float32)                 # (1, C, T)
    m = jnp.max(x, axis=1, keepdims=True)              # cross-sublane reduce (XLU)
    e = jnp.exp(x - m)                                  # EUP
    s = jnp.sum(e, axis=1, keepdims=True)               # (1, 1, T)
    inv = pl.reciprocal(s, approx=False)                # T exact reciprocals, not C*T divides
    o_ref[...] = (e * inv).astype(o_ref.dtype)


def _budgets():
    """(per-block f32 byte budget, vmem_limit_bytes) per TPU generation."""
    kind = ""
    try:
        kind = jax.devices()[0].device_kind.lower()
    except Exception:
        pass
    if "v7" in kind:
        # 64 MiB physical VMEM: ~5 MiB blocks -> ~30 MiB total incl. f32 temps.
        return 5 << 20, 48 << 20
    if "v6" in kind:
        # 128 MiB physical: grow blocks to ~8 MiB, raise the 32 MiB scoped default.
        return 8 << 20, 96 << 20
    if "v5" in kind:
        # 128 MiB physical but 16 MiB scoped default: raise limit, ~4 MiB blocks.
        return 4 << 20, 64 << 20
    # Unknown generation: be conservative (assume smallest VMEM, v7x-like).
    return 4 << 20, 40 << 20


def _choose_tile(hw, c_pad, block_budget_bytes, need_multiple_tiles):
    """Pick (hw_padded, T): T divides hw_padded, T % 128 == 0 (or T == hw).

    The block budget is counted in f32 bytes of the sublane-padded (c_pad, T)
    tile; total VMEM ~= 6x this (2x double-buffered in + out + f32 temps).
    """
    full_fits = c_pad * hw * 4 <= block_budget_bytes
    if hw % 128 != 0 and full_fits and (not need_multiple_tiles or hw < 256):
        return hw, hw                                   # full-extent block, no padding
    hw_pad = ((hw + 127) // 128) * 128

    max_t = (block_budget_bytes // (c_pad * 4)) // 128 * 128
    max_t = max(128, max_t)                             # 128 is the floor even if over budget
    n_lane_blocks = hw_pad // 128
    upper = max_t // 128
    if need_multiple_tiles and n_lane_blocks >= 2:
        upper = min(upper, n_lane_blocks // 2)          # guarantee >=2 grid steps
    upper = max(1, min(upper, n_lane_blocks))

    best = 1
    for d in range(upper, 0, -1):                       # largest 128-multiple divisor
        if n_lane_blocks % d == 0:
            best = d
            break
    return hw_pad, best * 128


@jax.jit
def features_forward(f):
    """Softmax over dim=1. f: (B, C, *spatial); returns same shape/dtype."""
    orig_shape = f.shape
    B, C = orig_shape[0], orig_shape[1]
    hw = 1
    for d in orig_shape[2:]:
        hw *= d
    x = f.reshape(B, C, hw)                             # lane-dense last axis

    itemsize = x.dtype.itemsize
    sublane = 8 if itemsize >= 4 else 16
    c_pad = ((C + sublane - 1) // sublane) * sublane    # sublane padding of channel axis

    block_budget, vmem_limit = _budgets()
    hw_pad, T = _choose_tile(hw, c_pad, block_budget, need_multiple_tiles=(B == 1))

    if hw_pad != hw:
        x = jnp.pad(x, ((0, 0), (0, 0), (0, hw_pad - hw)))

    grid = (B, hw_pad // T)

    out = pl.pallas_call(
        _softmax_c_kernel,
        out_shape=jax.ShapeDtypeStruct((B, C, hw_pad), f.dtype),
        grid_spec=pltpu.PrefetchScalarGridSpec(
            num_scalar_prefetch=0,
            grid=grid,
            in_specs=[pl.BlockSpec((1, C, T), lambda b, j: (b, 0, j))],
            out_specs=pl.BlockSpec((1, C, T), lambda b, j: (b, 0, j)),
        ),
        compiler_params=pltpu.CompilerParams(
            dimension_semantics=("parallel", "parallel"),
            vmem_limit_bytes=vmem_limit,
        ),
        cost_estimate=pl.CostEstimate(
            flops=int(5 * B * C * hw_pad),
            transcendentals=int(B * C * hw_pad),
            bytes_accessed=int(2 * B * C * hw_pad * itemsize),
        ),
    )(x)

    if hw_pad != hw:
        out = out[:, :, :hw]
    return out.reshape(orig_shape)


if __name__ == "__main__":
    # Small shapes consistent with the module: NCHW conv feature map.
    B, C, H, W = 2, 4, 16, 16

    key = jax.random.PRNGKey(0)
    f = jax.random.normal(key, (B, C, H, W), dtype=jnp.float32)

    out = features_forward(f)
    out = jax.block_until_ready(out)

    # Sanity check against plain-JAX reference (== torch.nn.Softmax(dim=1)).
    ref = jax.nn.softmax(f, axis=1)
    assert out.shape == f.shape
    assert out.dtype == f.dtype
    assert jnp.allclose(out, ref, atol=1e-5, rtol=1e-5)
    assert jnp.allclose(jnp.sum(out, axis=1), 1.0, atol=1e-5)

    print("KERNEL_OK")
</pallas_src>

<mosaic_0001>
module attributes {stable_mosaic.version = 11 : i64} {
  func.func @_softmax_c_kernel(%arg0: i32, %arg1: i32, %arg2: memref<1x4x256xf32, #tpu.memory_space<vmem>>, %arg3: memref<1x4x256xf32, #tpu.memory_space<vmem>>) attributes {dimension_semantics = [#tpu.dimension_semantics<parallel>, #tpu.dimension_semantics<parallel>], iteration_bounds = array<i64: 2, 1>, scalar_prefetch = 0 : i64, scratch_operands = 0 : i64, tpu.core_type = #tpu.core_type<tc>, window_params = [{transform_indices = @transform_0, window_bounds = array<i64: 1, 4, 256>}, {transform_indices = @transform_1, window_bounds = array<i64: 1, 4, 256>}]} {
    %c0 = arith.constant 0 : index
    %c0_0 = arith.constant 0 : index
    %c0_1 = arith.constant 0 : index
    %0 = vector.load %arg2[%c0, %c0_0, %c0_1] : memref<1x4x256xf32, #tpu.memory_space<vmem>>, vector<1x4x256xf32>
    %cst = arith.constant dense<0xFF800000> : vector<1x256xf32>
    %1 = vector.multi_reduction <maximumf>, %0, %cst [1] : vector<1x4x256xf32> to vector<1x256xf32>
    %2 = vector.shape_cast %1 : vector<1x256xf32> to vector<1x1x256xf32>
    %3 = vector.broadcast %2 : vector<1x1x256xf32> to vector<1x4x256xf32>
    %4 = arith.subf %0, %3 : vector<1x4x256xf32>
    %5 = math.exp %4 : vector<1x4x256xf32>
    %cst_2 = arith.constant dense<0.000000e+00> : vector<1x256xf32>
    %6 = vector.multi_reduction <add>, %5, %cst_2 [1] : vector<1x4x256xf32> to vector<1x256xf32>
    %7 = vector.shape_cast %6 : vector<1x256xf32> to vector<1x1x256xf32>
    %8 = tpu.reciprocal %7 : vector<1x1x256xf32> -> vector<1x1x256xf32>
    %9 = vector.broadcast %8 : vector<1x1x256xf32> to vector<1x4x256xf32>
    %10 = arith.mulf %5, %9 : vector<1x4x256xf32>
    %c0_3 = arith.constant 0 : index
    %c0_4 = arith.constant 0 : index
    %c0_5 = arith.constant 0 : index
    %11 = vector.load %arg3[%c0_3, %c0_4, %c0_5] : memref<1x4x256xf32, #tpu.memory_space<vmem>>, vector<1x4x256xf32>
    tpu.vector_store %arg3[%c0_3, %c0_4, %c0_5], %10 {strides = array<i32>} : memref<1x4x256xf32, #tpu.memory_space<vmem>>, vector<1x4x256xf32>,
    return
  }
  func.func @transform_0(%arg0: i32, %arg1: i32) -> (i32, i32, i32) {
    %c0_i32 = arith.constant 0 : i32
    %c0_i32_0 = arith.constant 0 : i32
    return %arg0, %c0_i32, %arg1 : i32, i32, i32
  }
  func.func @transform_1(%arg0: i32, %arg1: i32) -> (i32, i32, i32) {
    %c0_i32 = arith.constant 0 : i32
    %c0_i32_0 = arith.constant 0 : i32
    return %arg0, %c0_i32, %arg1 : i32, i32, i32
  }
}

</mosaic_0001>

<llo_original>
// kernel: features_forward.1
$region0: #{features_forward.1}
  #allocation0 [shape = 'u32[]', space=smem, size = 0x4, offset = 0x4, fixed_abs, tag = 'smem constant byte address 0x4 - core index']
  #allocation1 [shape = 'u32[72,128]{1,0:T(1,128)}', space=vmem, size = 0x9000, scoped, tag = 'internal scratch']
  %s0 = inlined_call_operand.vmem [shape: f32[2,4,256], index: 0, kind: input, shape index: {}]
  %s1 = inlined_call_operand.vmem [shape: f32[2,4,256], index: 1, kind: output, shape index: {}]
  %s2 = sld [smem:[#allocation0]]
  $region37: #{features_forward.1} parent=0
    _
  %s4 = ssub.s32 1, %s2
  %s5 = scalar_select 0, %s4, %s2
  loop: start=0, step=1, limit=4
  $region2: #{features_forward.1} parent=0 // loop_pre_header
    _
  $region3: #{features_forward.1} parent=0 // loop_header
    %s7 = sphi 0, %s11
    %p8 = scmp.ge.s32.totalorder %s7, 4
    %s14 = sphi 0, %s26
    %s15 = sphi 0, %s22
    %s16 = sphi 0, %s14
    %s17 = sphi 0, %s15
    %s18 = sphi 0, %s16
    %s19 = sphi 0, %s17
    %s31 = sphi 0, %s33
    %s34 = sphi 0, %s31
    %s35 = sphi 0, %s34
    %s51 = sphi 0, %s35
    %s59 = sphi 0, %s61
    %s62 = sphi 0, %s59
    %s63 = sphi 0, %s62
    %s79 = sphi 0, %s63
  $region4: #{features_forward.1} parent=0 // loop_header_branch
    %10 = sbr.rel (%p8) target = $region8
  $region5: #{features_forward.1} parent=0 // loop_body
    %s12 = ssub.s32 %s7, 1
    %s13 = ssub.s32 %s7, 2
    %s20 = sadd.s32 1, %s15
    %p21 = scmp.ge.s32.totalorder %s20, 1
    %s22 = scalar_select %p21, 0, %s20
    %s23 = sadd.s32 1, %s14
    %s24 = scalar_select %p21, %s23, %s14
    %p25 = scmp.ge.s32.totalorder %s24, 2
    %s26 = scalar_select %p25, 0, %s24
    %s27 = ssub.s32 %s14, %s26
    %s28 = ssub.s32 %s15, %s22
    %s29 = sor.u32 %s27, %s28
    %p30 = scmp.eq.s32.totalorder %s29, 0
    %s32 = sadd.s32 %s31, 1
    %s33 = scalar_select %p30, %s31, %s32
    %p36 = pneg %p30
    %p37 = scmp.eq.s32.totalorder %s7, 1
    %p38 = por %p36, %p37
    %p39 = scmp.ne.s32.totalorder %s31, %s34
    %p40 = scmp.eq.s32.totalorder %s7, 0
    %p41 = por %p39, %p40
    %p42 = scmp.ne.s32.totalorder %s31, %s34
    %p43 = scmp.eq.s32.totalorder %s12, 1
    %p44 = por %p42, %p43
    %p45 = scmp.ne.s32.totalorder %s34, %s35
    %p46 = scmp.eq.s32.totalorder %s12, 0
    %p47 = por %p45, %p46
    %p48 = scmp.ne.s32.totalorder %s34, %s35
    %p49 = scmp.eq.s32.totalorder %s13, 1
    %p50 = por %p48, %p49
    %p52 = scmp.ne.s32.totalorder %s35, %s51
    %p53 = scmp.eq.s32.totalorder %s13, 0
    %p54 = por %p52, %p53
    %s55 = ssub.s32 %s14, %s26
    %s56 = ssub.s32 %s15, %s22
    %s57 = sor.u32 %s55, %s56
    %p58 = scmp.eq.s32.totalorder %s57, 0
    %s60 = sadd.s32 %s59, 1
    %s61 = scalar_select %p58, %s59, %s60
    %p64 = pneg %p58
    %p65 = scmp.eq.s32.totalorder %s7, 1
    %p66 = por %p64, %p65
    %p67 = scmp.ne.s32.totalorder %s59, %s62
    %p68 = scmp.eq.s32.totalorder %s7, 0
    %p69 = por %p67, %p68
    %p70 = scmp.ne.s32.totalorder %s59, %s62
    %p71 = scmp.eq.s32.totalorder %s12, 1
    %p72 = por %p70, %p71
    %p73 = scmp.ne.s32.totalorder %s62, %s63
    %p74 = scmp.eq.s32.totalorder %s12, 0
    %p75 = por %p73, %p74
    %p76 = scmp.ne.s32.totalorder %s62, %s63
    %p77 = scmp.eq.s32.totalorder %s13, 1
    %p78 = por %p76, %p77
    %p80 = scmp.ne.s32.totalorder %s63, %s79
    %p81 = scmp.eq.s32.totalorder %s13, 0
    %p82 = por %p80, %p81
    %p83 = scmp.le.s32.totalorder 1, %s7
    %p84 = scmp.lt.s32.totalorder %s7, 3
    %p85 = pnand %p83, %p84
    %p86 = pneg %p85
    // Predicated region
    $region9: #{features_forward.1} parent=5 // pred_check
      _
    $region10: #{features_forward.1} parent=5 // pred_check_branch
      %88 = sbr.rel (%p85) target = $region12
    $region11: #{features_forward.1} parent=5 // pred_region
      %s89 = ssub.s32 %s7, 1
    $region12: #{features_forward.1} parent=5 // pred_fallthru
      _
    %p90 = scmp.lt.s32.totalorder %s7, 2
    // Predicated region
    $region13: #{features_forward.1} parent=5 // pred_check
      %p91 = pneg %p90
    $region14: #{features_forward.1} parent=5 // pred_check_branch
      %93 = sbr.rel (%p91) target = $region16
    $region15: #{features_forward.1} parent=5 // pred_region
      // Predicated region
      $region17: #{features_forward.1} parent=15 // pred_check
        %p94 = pneg %p41
      $region18: #{features_forward.1} parent=15 // pred_check_branch
        %96 = sbr.rel (%p94) target = $region20
      $region19: #{features_forward.1} parent=15 // pred_region
        %s97 = smul.u32 2, %s15
        %p98 = scmp.lt.s32.totalorder %s14, 1
        %s99 = scalar_select %p98, %s14, 1
        %p100 = scmp.lt.s32.totalorder %s97, 1
        %s101 = scalar_select %p100, %s97, 1
        %s102 = smul.addr %s99, 2
        %s103 = sadd.s32 %s101, %s102
        %s104 = smul.addr %s103, 4
        %s105 = scalar_lea.vmem %s0, %s104
        %s106 = smul.u32 2, %s15
      $region20: #{features_forward.1} parent=15 // pred_fallthru
        _
    $region16: #{features_forward.1} parent=5 // pred_fallthru
      _
    %p107 = scmp.le.s32.totalorder 1, %s7
    %p108 = scmp.lt.s32.totalorder %s7, 3
    %p109 = pnand %p107, %p108
    %p110 = pneg %p109
    // Predicated region
    $region21: #{features_forward.1} parent=5 // pred_check
      _
    $region22: #{features_forward.1} parent=5 // pred_check_branch
      %112 = sbr.rel (%p109) target = $region24
    $region23: #{features_forward.1} parent=5 // pred_region
      %s113 = ssub.s32 %s7, 1
      %s114 = smul.u32 2, %s17
      %p115 = scmp.lt.s32.totalorder %s16, 1
      %s116 = scalar_select %p115, %s16, 1
      %p117 = scmp.lt.s32.totalorder %s114, 1
      %s118 = scalar_select %p117, %s114, 1
      %s119 = smul.addr %s116, 2
      %s120 = sadd.s32 %s118, %s119
      %s121 = smul.addr %s120, 4
      %s122 = scalar_lea.vmem %s0, %s121
      %p123 = pneg %p47
      %p124 = pneg %p44
      %p125 = pneg %p75
      %p126 = pneg %p72
      %s127 = smul.u32 2, %s17
      %p128 = scmp.lt.s32.totalorder %s16, 1
      %s129 = scalar_select %p128, %s16, 1
      %p130 = scmp.lt.s32.totalorder %s127, 1
      %s131 = scalar_select %p130, %s127, 1
      %s132 = smul.addr %s129, 2
      %s133 = sadd.s32 %s131, %s132
      %s134 = smul.addr %s133, 4
      %s135 = scalar_lea.vmem %s1, %s134
      %s136 = smul.u32 2, %s17
      %p137 = scmp.lt.s32.totalorder %s16, 1
      %s138 = scalar_select %p137, %s16, 1
      %p139 = scmp.lt.s32.totalorder %s136, 1
      %s140 = scalar_select %p139, %s136, 1
      %s141 = smul.addr %s138, 2
      %s142 = sadd.s32 %s140, %s141
      %s143 = smul.addr %s142, 4
      %s144 = scalar_lea.vmem %s0, %s143
      %s145 = smul.u32 2, %s17
      %s146 = smul.u32 2, %s17
      %p147 = scmp.lt.s32.totalorder %s16, 1
      %s148 = scalar_select %p147, %s16, 1
      %p149 = scmp.lt.s32.totalorder %s146, 1
      %s150 = scalar_select %p149, %s146, 1
      %s151 = smul.addr %s148, 2
      %s152 = sadd.s32 %s150, %s151
      %s153 = smul.addr %s152, 4
      %s154 = scalar_lea.vmem %s1, %s153
      %s155 = smul.u32 2, %s17
      %v156 = vld [vmem:[%s144] sm:$0xff]
      %158 = vst [vmem:[#allocation1] ss:$2 sm:$0xff] %v156
      %v159 = vld.sshfl [vmem:[#allocation1] sm:$0xff pattern:$0x75316420]
      %v160 = vld.sshfl [vmem:[#allocation1 + $0x8] sm:$0xff pattern:$0x75316420]
      %vm163 = vcmask 1043456
      %v164 = vsel %vm163, %v159, -inf
      %v165 = vrot.slane %v164, 4
      %v166 = vmax.f32 %v164, %v165
      %v167 = vrot.slane %v166, 2
      %v168 = vmax.f32 %v166, %v167
      %v169 = vrot.slane %v168, 1
      %v170 = vmax.f32 %v168, %v169
      %v171 = vsel %vm163, %v160, -inf
      %v172 = vrot.slane %v171, 4
      %v173 = vmax.f32 %v171, %v172
      %v174 = vrot.slane %v173, 2
      %v175 = vmax.f32 %v173, %v174
      %v176 = vrot.slane %v175, 1
      %v177 = vmax.f32 %v175, %v176
      %v180 = vrot.slane %v177, 4
      %v181 = vsel %vm163, %v170, %v180
      %v183 = vsub.f32 %v156, %v181
      %v184 = vmul.f32 %v183, 1.442695
      %v185 = vpow.pop %v184
      %187 = vst [vmem:[#allocation1] ss:$2 sm:$0xff] %v185
      %v188 = vld.sshfl [vmem:[#allocation1] sm:$0xff pattern:$0x75316420]
      %v189 = vld.sshfl [vmem:[#allocation1 + $0x8] sm:$0xff pattern:$0x75316420]
      %v192 = vsel %vm163, %v188, 0.0
      %v193 = vrot.slane %v192, 4
      %v194 = vadd.f32 %v192, %v193
      %v195 = vrot.slane %v194, 2
      %v196 = vadd.f32 %v194, %v195
      %v197 = vrot.slane %v196, 1
      %v198 = vadd.f32 %v196, %v197
      %v199 = vsel %vm163, %v189, 0.0
      %v200 = vrot.slane %v199, 4
      %v201 = vadd.f32 %v199, %v200
      %v202 = vrot.slane %v201, 2
      %v203 = vadd.f32 %v201, %v202
      %v204 = vrot.slane %v203, 1
      %v205 = vadd.f32 %v203, %v204
      %v206 = vrcp.pop %v198
      %v207 = vmul.f32 %v198, %v206
      %v208 = vsub.f32 1.0, %v207
      %v209 = vmul.f32 %v206, %v208
      %v210 = vadd.f32 %v206, %v209
      %vm211 = vweird.f32 %v198
      %vm212 = vweird.f32 %v206
      %vm213 = vmor %vm211, %vm212
      %v214 = vsel %vm213, %v206, %v210
      %v215 = vand.u32 2147483647, %v198
      %vm216 = vcmp.eq.f32.partialorder %v215, 8.507059e+37
      %v217 = vand.u32 %v198, 2147483648
      %v218 = vor.u32 1.1754944e-38, %v217
      %v219 = vsel %vm216, %v218, %v214
      %v220 = vrcp.pop %v205
      %v221 = vmul.f32 %v205, %v220
      %v222 = vsub.f32 1.0, %v221
      %v223 = vmul.f32 %v220, %v222
      %v224 = vadd.f32 %v220, %v223
      %vm225 = vweird.f32 %v205
      %vm226 = vweird.f32 %v220
      %vm227 = vmor %vm225, %vm226
      %v228 = vsel %vm227, %v220, %v224
      %v229 = vand.u32 2147483647, %v205
      %vm230 = vcmp.eq.f32.partialorder %v229, 8.507059e+37
      %v231 = vand.u32 %v205, 2147483648
      %v232 = vor.u32 1.1754944e-38, %v231
      %v233 = vsel %vm230, %v232, %v228
      %v236 = vrot.slane %v233, 4
      %v237 = vsel %vm163, %v219, %v236
      %v239 = vmul.f32 %v185, %v237
      %240 = vst [vmem:[%s154] sm:$0xff] %v239
      %s241 = smul.u32 2, %s17
      %p242 = scmp.lt.s32.totalorder %s16, 1
      %s243 = scalar_select %p242, %s16, 1
      %p244 = scmp.lt.s32.totalorder %s241, 1
      %s245 = scalar_select %p244, %s241, 1
      %s246 = smul.addr %s243, 2
      %s247 = sadd.s32 %s245, %s246
      %s248 = smul.addr %s247, 4
      %s249 = scalar_lea.vmem %s1, %s248
      // Predicated region
      $region25: #{features_forward.1} parent=23 // pred_check
        %p250 = pneg %p72
      $region26: #{features_forward.1} parent=23 // pred_check_branch
        %252 = sbr.rel (%p250) target = $region28
      $region27: #{features_forward.1} parent=23 // pred_region
        %s253 = smul.u32 2, %s17
      $region28: #{features_forward.1} parent=23 // pred_fallthru
        _
    $region24: #{features_forward.1} parent=5 // pred_fallthru
      _
    %p254 = scmp.le.s32.totalorder 2, %s7
    // Predicated region
    $region29: #{features_forward.1} parent=5 // pred_check
      %p255 = pneg %p254
    $region30: #{features_forward.1} parent=5 // pred_check_branch
      %257 = sbr.rel (%p255) target = $region32
    $region31: #{features_forward.1} parent=5 // pred_region
      %s258 = ssub.s32 %s7, 2
      // Predicated region
      $region33: #{features_forward.1} parent=31 // pred_check
        %p259 = pneg %p78
      $region34: #{features_forward.1} parent=31 // pred_check_branch
        %261 = sbr.rel (%p259) target = $region36
      $region35: #{features_forward.1} parent=31 // pred_region
        %s262 = smul.u32 2, %s19
        %p263 = scmp.lt.s32.totalorder %s18, 1
        %s264 = scalar_select %p263, %s18, 1
        %p265 = scmp.lt.s32.totalorder %s262, 1
        %s266 = scalar_select %p265, %s262, 1
        %s267 = smul.addr %s264, 2
        %s268 = sadd.s32 %s266, %s267
        %s269 = smul.addr %s268, 4
        %s270 = scalar_lea.vmem %s1, %s269
      $region36: #{features_forward.1} parent=31 // pred_fallthru
        _
    $region32: #{features_forward.1} parent=5 // pred_fallthru
      _
  $region6: #{features_forward.1} parent=0 // loop_footer
    %s11 = sadd.s32 1, %s7
  $region7: #{features_forward.1} parent=0 // loop_footer_branch
    %6 = sbr.rel target = $region3
  $region8: #{features_forward.1} parent=0 // loop_exit
    _

</llo_original>
